<compile_context>
chip_gen: v7x
topology: tpu7x:2x2x1
jax: 0.10.0
libtpu: 0.0.40
codegen_flags: <defaults>
</compile_context>

<pallas_src>
import functools

import jax
import jax.numpy as jnp
from jax import lax
from jax.experimental import pallas as pl
from jax.experimental.pallas import tpu as pltpu

NUM_CLASSES = 10        # true classifier width
PAD_CLASSES = 128       # lane-dense padded width (multiple of 128)
IN_FEATURES = 784
HIDDEN = 128


def _round_up(x, m):
    return (x + m - 1) // m * m


def mlp_logsoftmax_kernel(x_ref, w1_ref, b1_ref, w2_ref, b2_ref, w3_ref, b3_ref, o_ref):
    # x_ref: (TB, 784) bf16; w1:(784,128) w2:(128,128) w3:(128,128) bf16; biases (1,N) f32.
    x = x_ref[...]

    # Load biases once into f32 vregs (no re-broadcast inside expressions).
    b1 = b1_ref[...]
    b2 = b2_ref[...]
    b3 = b3_ref[...]

    # fc1 + ReLU (bf16 MXU inputs, f32 accumulate)
    h1 = jnp.dot(x, w1_ref[...], preferred_element_type=jnp.float32) + b1
    h1 = jnp.maximum(h1, 0.0)

    # fc2 + ReLU
    h2 = jnp.dot(h1.astype(jnp.bfloat16), w2_ref[...],
                 preferred_element_type=jnp.float32) + b2
    h2 = jnp.maximum(h2, 0.0)

    # fc3 (padded to 128 lanes) + ReLU  (ReLU after fc3 matches the torch loop)
    z = jnp.dot(h2.astype(jnp.bfloat16), w3_ref[...],
                preferred_element_type=jnp.float32) + b3
    z = jnp.maximum(z, 0.0)

    # Mask the 118 padded lanes to a huge negative AFTER ReLU, BEFORE max/exp-sum,
    # so they contribute exp(~-inf)=0 to the softmax denominator.
    col = lax.broadcasted_iota(jnp.int32, z.shape, 1)
    z = jnp.where(col < NUM_CLASSES, z, jnp.float32(-1e30))

    # Numerically stable log_softmax over the lane axis.
    m = jnp.max(z, axis=-1, keepdims=True)
    s = z - m
    lse = jnp.log(jnp.sum(jnp.exp(s), axis=-1, keepdims=True))
    o_ref[...] = s - lse


@functools.partial(jax.jit, static_argnames=())
def net_forward(x_nchw, params):
    w1, b1, w2, b2, w3, b3 = params
    B = x_nchw.shape[0]

    # torch.flatten(x, 1); cast to bf16 once here (fused with producer, halves x DMA bytes).
    x_flat = x_nchw.reshape(B, -1).astype(jnp.bfloat16)

    # Batch tile: big enough to feed the MXU / amortize per-step overhead, sublane-aligned.
    TB = min(1024, _round_up(B, 8))
    n_tiles = pl.cdiv(B, TB)
    B_pad = n_tiles * TB
    if B_pad != B:
        x_flat = jnp.pad(x_flat, ((0, B_pad - B), (0, 0)))

    # Lane-dense classifier: zero-pad fc3 to 128 output lanes.
    w3p = jnp.zeros((HIDDEN, PAD_CLASSES), w3.dtype).at[:, :NUM_CLASSES].set(w3)
    b3p = jnp.zeros((1, PAD_CLASSES), b3.dtype).at[:, :NUM_CLASSES].set(b3)

    # bf16 weights for the MXU; biases stay f32.
    w1b = w1.astype(jnp.bfloat16)
    w2b = w2.astype(jnp.bfloat16)
    w3b = w3p.astype(jnp.bfloat16)
    b1f = b1.astype(jnp.float32)
    b2f = b2.astype(jnp.float32)
    b3f = b3p.astype(jnp.float32)

    def resident(shp):  # weights/biases: same block every grid step -> stay in VMEM
        return pl.BlockSpec(shp, lambda i: tuple(0 for _ in shp))

    flops = 2 * B_pad * (IN_FEATURES * HIDDEN + HIDDEN * HIDDEN + HIDDEN * PAD_CLASSES)
    bytes_accessed = (
        B_pad * IN_FEATURES * 2                                   # x (bf16)
        + (IN_FEATURES * HIDDEN + HIDDEN * HIDDEN + HIDDEN * PAD_CLASSES) * 2  # weights (bf16)
        + (HIDDEN + HIDDEN + PAD_CLASSES) * 4                     # biases (f32)
        + B_pad * PAD_CLASSES * 4                                 # output (f32)
    )
    cost = pl.CostEstimate(
        flops=flops,
        transcendentals=B_pad * (PAD_CLASSES + 1),                # exp per lane + log per row
        bytes_accessed=bytes_accessed,
    )

    out_padded = pl.pallas_call(
        mlp_logsoftmax_kernel,
        out_shape=jax.ShapeDtypeStruct((B_pad, PAD_CLASSES), jnp.float32),
        grid=(n_tiles,),
        in_specs=[
            pl.BlockSpec((TB, IN_FEATURES), lambda i: (i, 0)),
            resident(w1b.shape), resident(b1f.shape),
            resident(w2b.shape), resident(b2f.shape),
            resident(w3b.shape), resident(b3f.shape),
        ],
        out_specs=pl.BlockSpec((TB, PAD_CLASSES), lambda i: (i, 0)),
        compiler_params=pltpu.CompilerParams(
            dimension_semantics=("parallel",),
        ),
        cost_estimate=cost,
    )(x_flat, w1b, b1f, w2b, b2f, w3b, b3f)

    return out_padded[:B, :NUM_CLASSES]


def init_params(key):
    # Deterministic synthetic init (shapes from nn.Linear(784,128), (128,128), (128,10)),
    # stored as (in_features, out_features) so the kernel computes x @ W + b.
    k1, k2, k3 = jax.random.split(key, 3)
    scale = 0.02
    w1 = scale * jax.random.normal(k1, (IN_FEATURES, HIDDEN), dtype=jnp.float32)
    b1 = jnp.zeros((1, HIDDEN), dtype=jnp.float32)
    w2 = scale * jax.random.normal(k2, (HIDDEN, HIDDEN), dtype=jnp.float32)
    b2 = jnp.zeros((1, HIDDEN), dtype=jnp.float32)
    w3 = scale * jax.random.normal(k3, (HIDDEN, NUM_CLASSES), dtype=jnp.float32)
    b3 = jnp.zeros((1, NUM_CLASSES), dtype=jnp.float32)
    return (w1, b1, w2, b2, w3, b3)


def reference_forward(x_nchw, params):
    # Pure-JAX reference mirroring the kernel's numerics (bf16 matmul inputs, f32 accumulate).
    w1, b1, w2, b2, w3, b3 = params
    x = x_nchw.reshape(x_nchw.shape[0], -1).astype(jnp.float32)

    def lin_relu(a, w, b):
        y = jnp.dot(a.astype(jnp.bfloat16), w.astype(jnp.bfloat16),
                    preferred_element_type=jnp.float32) + b
        return jnp.maximum(y, 0.0)

    h = lin_relu(x, w1, b1)
    h = lin_relu(h, w2, b2)
    h = lin_relu(h, w3, b3)
    return jax.nn.log_softmax(h, axis=1)


if __name__ == "__main__":
    key = jax.random.PRNGKey(0)
    kp, kx = jax.random.split(key)
    params = init_params(kp)

    # MNIST-like input: batch=2, 1 channel, 28x28 -> flattened 784 features.
    x = jax.random.normal(kx, (2, 1, 28, 28), dtype=jnp.float32)

    out = net_forward(x, params)
    out = jax.block_until_ready(out)

    ref = reference_forward(x, params)
    assert out.shape == (2, NUM_CLASSES)
    assert jnp.allclose(out, ref, atol=1e-3, rtol=1e-3), "mismatch vs pure-JAX reference"

    print("KERNEL_OK")
</pallas_src>

<mosaic_0001>
module attributes {stable_mosaic.version = 11 : i64} {
  func.func @mlp_logsoftmax_kernel(%arg0: i32, %arg1: memref<8x784xbf16, #tpu.memory_space<vmem>>, %arg2: memref<784x128xbf16, #tpu.memory_space<vmem>>, %arg3: memref<1x128xf32, #tpu.memory_space<vmem>>, %arg4: memref<128x128xbf16, #tpu.memory_space<vmem>>, %arg5: memref<1x128xf32, #tpu.memory_space<vmem>>, %arg6: memref<128x128xbf16, #tpu.memory_space<vmem>>, %arg7: memref<1x128xf32, #tpu.memory_space<vmem>>, %arg8: memref<8x128xf32, #tpu.memory_space<vmem>>) attributes {dimension_semantics = [#tpu.dimension_semantics<parallel>], iteration_bounds = array<i64: 1>, scalar_prefetch = 0 : i64, scratch_operands = 0 : i64, tpu.core_type = #tpu.core_type<tc>, window_params = [{transform_indices = @transform_0, window_bounds = array<i64: 8, 784>}, {pipeline_mode = #tpu.pipeline_mode<synchronous>, transform_indices = @transform_1, window_bounds = array<i64: 784, 128>}, {pipeline_mode = #tpu.pipeline_mode<synchronous>, transform_indices = @transform_2, window_bounds = array<i64: 1, 128>}, {pipeline_mode = #tpu.pipeline_mode<synchronous>, transform_indices = @transform_3, window_bounds = array<i64: 128, 128>}, {pipeline_mode = #tpu.pipeline_mode<synchronous>, transform_indices = @transform_4, window_bounds = array<i64: 1, 128>}, {pipeline_mode = #tpu.pipeline_mode<synchronous>, transform_indices = @transform_5, window_bounds = array<i64: 128, 128>}, {pipeline_mode = #tpu.pipeline_mode<synchronous>, transform_indices = @transform_6, window_bounds = array<i64: 1, 128>}, {transform_indices = @transform_7, window_bounds = array<i64: 8, 128>}]} {
    %c0 = arith.constant 0 : index
    %c0_0 = arith.constant 0 : index
    %0 = vector.load %arg1[%c0, %c0_0] : memref<8x784xbf16, #tpu.memory_space<vmem>>, vector<8x784xbf16>
    %c0_1 = arith.constant 0 : index
    %c0_2 = arith.constant 0 : index
    %1 = vector.load %arg3[%c0_1, %c0_2] : memref<1x128xf32, #tpu.memory_space<vmem>>, vector<1x128xf32>
    %c0_3 = arith.constant 0 : index
    %c0_4 = arith.constant 0 : index
    %2 = vector.load %arg5[%c0_3, %c0_4] : memref<1x128xf32, #tpu.memory_space<vmem>>, vector<1x128xf32>
    %c0_5 = arith.constant 0 : index
    %c0_6 = arith.constant 0 : index
    %3 = vector.load %arg7[%c0_5, %c0_6] : memref<1x128xf32, #tpu.memory_space<vmem>>, vector<1x128xf32>
    %c0_7 = arith.constant 0 : index
    %c0_8 = arith.constant 0 : index
    %4 = vector.load %arg2[%c0_7, %c0_8] : memref<784x128xbf16, #tpu.memory_space<vmem>>, vector<784x128xbf16>
    %cst = arith.constant dense<0.000000e+00> : vector<8x128xf32>
    %5 = tpu.matmul %0, %4, %cst {dimension_numbers = #tpu.dot_dimension_numbers<[1], [0], [0], [1], [0, 0, 1, 1], [], []>} : vector<8x784xbf16>, vector<784x128xbf16>, vector<8x128xf32> -> vector<8x128xf32>
    %6 = vector.broadcast %1 : vector<1x128xf32> to vector<8x128xf32>
    %7 = arith.addf %5, %6 : vector<8x128xf32>
    %cst_9 = arith.constant 0.000000e+00 : f32
    %8 = vector.broadcast %cst_9 : f32 to vector<8x128xf32>
    %9 = arith.maximumf %7, %8 : vector<8x128xf32>
    %10 = arith.truncf %9 : vector<8x128xf32> to vector<8x128xbf16>
    %c0_10 = arith.constant 0 : index
    %c0_11 = arith.constant 0 : index
    %11 = vector.load %arg4[%c0_10, %c0_11] : memref<128x128xbf16, #tpu.memory_space<vmem>>, vector<128x128xbf16>
    %cst_12 = arith.constant dense<0.000000e+00> : vector<8x128xf32>
    %12 = tpu.matmul %10, %11, %cst_12 {dimension_numbers = #tpu.dot_dimension_numbers<[1], [0], [0], [1], [0, 0, 1, 1], [], []>} : vector<8x128xbf16>, vector<128x128xbf16>, vector<8x128xf32> -> vector<8x128xf32>
    %13 = vector.broadcast %2 : vector<1x128xf32> to vector<8x128xf32>
    %14 = arith.addf %12, %13 : vector<8x128xf32>
    %cst_13 = arith.constant 0.000000e+00 : f32
    %15 = vector.broadcast %cst_13 : f32 to vector<8x128xf32>
    %16 = arith.maximumf %14, %15 : vector<8x128xf32>
    %17 = arith.truncf %16 : vector<8x128xf32> to vector<8x128xbf16>
    %c0_14 = arith.constant 0 : index
    %c0_15 = arith.constant 0 : index
    %18 = vector.load %arg6[%c0_14, %c0_15] : memref<128x128xbf16, #tpu.memory_space<vmem>>, vector<128x128xbf16>
    %cst_16 = arith.constant dense<0.000000e+00> : vector<8x128xf32>
    %19 = tpu.matmul %17, %18, %cst_16 {dimension_numbers = #tpu.dot_dimension_numbers<[1], [0], [0], [1], [0, 0, 1, 1], [], []>} : vector<8x128xbf16>, vector<128x128xbf16>, vector<8x128xf32> -> vector<8x128xf32>
    %20 = vector.broadcast %3 : vector<1x128xf32> to vector<8x128xf32>
    %21 = arith.addf %19, %20 : vector<8x128xf32>
    %cst_17 = arith.constant 0.000000e+00 : f32
    %22 = vector.broadcast %cst_17 : f32 to vector<8x128xf32>
    %23 = arith.maximumf %21, %22 : vector<8x128xf32>
    %24 = tpu.iota {dimensions = array<i32: 1>} : vector<8x128xi32>
    %c10_i32 = arith.constant 10 : i32
    %25 = vector.broadcast %c10_i32 : i32 to vector<8x128xi32>
    %26 = arith.cmpi slt, %24, %25 : vector<8x128xi32>
    %cst_18 = arith.constant -1.000000e+30 : f32
    %27 = vector.broadcast %cst_18 : f32 to vector<8x128xf32>
    %28 = arith.select %26, %23, %27 : vector<8x128xi1>, vector<8x128xf32>
    %cst_19 = arith.constant dense<0xFF800000> : vector<8xf32>
    %29 = vector.multi_reduction <maximumf>, %28, %cst_19 [1] : vector<8x128xf32> to vector<8xf32>
    %30 = vector.shape_cast %29 : vector<8xf32> to vector<8x1xf32>
    %31 = vector.broadcast %30 : vector<8x1xf32> to vector<8x128xf32>
    %32 = arith.subf %28, %31 : vector<8x128xf32>
    %33 = math.exp %32 : vector<8x128xf32>
    %cst_20 = arith.constant dense<0.000000e+00> : vector<8xf32>
    %34 = vector.multi_reduction <add>, %33, %cst_20 [1] : vector<8x128xf32> to vector<8xf32>
    %35 = vector.shape_cast %34 : vector<8xf32> to vector<8x1xf32>
    %36 = math.log %35 : vector<8x1xf32>
    %37 = vector.broadcast %36 : vector<8x1xf32> to vector<8x128xf32>
    %38 = arith.subf %32, %37 : vector<8x128xf32>
    %c0_21 = arith.constant 0 : index
    %c0_22 = arith.constant 0 : index
    %39 = vector.load %arg8[%c0_21, %c0_22] : memref<8x128xf32, #tpu.memory_space<vmem>>, vector<8x128xf32>
    tpu.vector_store %arg8[%c0_21, %c0_22], %38 {strides = array<i32>} : memref<8x128xf32, #tpu.memory_space<vmem>>, vector<8x128xf32>,
    return
  }
  func.func @transform_0(%arg0: i32) -> (i32, i32) {
    %c0_i32 = arith.constant 0 : i32
    %c0_i32_0 = arith.constant 0 : i32
    return %arg0, %c0_i32 : i32, i32
  }
  func.func @transform_1(%arg0: i32) -> (i32, i32) {
    %c0_i32 = arith.constant 0 : i32
    %c0_i32_0 = arith.constant 0 : i32
    %c0_i32_1 = arith.constant 0 : i32
    return %c0_i32, %c0_i32_0 : i32, i32
  }
  func.func @transform_2(%arg0: i32) -> (i32, i32) {
    %c0_i32 = arith.constant 0 : i32
    %c0_i32_0 = arith.constant 0 : i32
    %c0_i32_1 = arith.constant 0 : i32
    return %c0_i32, %c0_i32_0 : i32, i32
  }
  func.func @transform_3(%arg0: i32) -> (i32, i32) {
    %c0_i32 = arith.constant 0 : i32
    %c0_i32_0 = arith.constant 0 : i32
    %c0_i32_1 = arith.constant 0 : i32
    return %c0_i32, %c0_i32_0 : i32, i32
  }
  func.func @transform_4(%arg0: i32) -> (i32, i32) {
    %c0_i32 = arith.constant 0 : i32
    %c0_i32_0 = arith.constant 0 : i32
    %c0_i32_1 = arith.constant 0 : i32
    return %c0_i32, %c0_i32_0 : i32, i32
  }
  func.func @transform_5(%arg0: i32) -> (i32, i32) {
    %c0_i32 = arith.constant 0 : i32
    %c0_i32_0 = arith.constant 0 : i32
    %c0_i32_1 = arith.constant 0 : i32
    return %c0_i32, %c0_i32_0 : i32, i32
  }
  func.func @transform_6(%arg0: i32) -> (i32, i32) {
    %c0_i32 = arith.constant 0 : i32
    %c0_i32_0 = arith.constant 0 : i32
    %c0_i32_1 = arith.constant 0 : i32
    return %c0_i32, %c0_i32_0 : i32, i32
  }
  func.func @transform_7(%arg0: i32) -> (i32, i32) {
    %c0_i32 = arith.constant 0 : i32
    %c0_i32_0 = arith.constant 0 : i32
    return %arg0, %c0_i32 : i32, i32
  }
}

</mosaic_0001>

<llo_original>
// kernel: net_forward.1
$region0: #{net_forward.1}
  #allocation0 [shape = 'u32[]', space=smem, size = 0x4, offset = 0x4, fixed_abs, tag = 'smem constant byte address 0x4 - core index']
  #allocation1 [shape = 'u32[144,128]{1,0:T(1,128)}', space=vmem, size = 0x12000, scoped, tag = 'internal scratch']
  %s0 = inlined_call_operand.vmem [shape: bf16[8,784], index: 0, kind: input, shape index: {}]
  %s1 = inlined_call_operand.vmem [shape: bf16[784,128], index: 1, kind: input, shape index: {}]
  %s2 = inlined_call_operand.vmem [shape: f32[1,128], index: 2, kind: input, shape index: {}]
  %s3 = inlined_call_operand.vmem [shape: bf16[128,128], index: 3, kind: input, shape index: {}]
  %s4 = inlined_call_operand.vmem [shape: f32[1,128], index: 4, kind: input, shape index: {}]
  %s5 = inlined_call_operand.vmem [shape: bf16[128,128], index: 5, kind: input, shape index: {}]
  %s6 = inlined_call_operand.vmem [shape: f32[1,128], index: 6, kind: input, shape index: {}]
  %s7 = inlined_call_operand.vmem [shape: f32[8,128], index: 7, kind: output, shape index: {}]
  %s8 = sld [smem:[#allocation0]]
  $region38: #{net_forward.1} parent=0
    _
  %s10 = ssub.s32 1, %s8
  %s11 = scalar_select 0, %s10, %s8
  // Predicated region
  $region2: #{net_forward.1} parent=0 // pred_check
    _
  $region3: #{net_forward.1} parent=0 // pred_check_branch
    %13 = sbr.rel (0) target = $region5
  $region4: #{net_forward.1} parent=0 // pred_region
    _
  $region5: #{net_forward.1} parent=0 // pred_fallthru
    _
  // Predicated region
  $region6: #{net_forward.1} parent=0 // pred_check
    _
  $region7: #{net_forward.1} parent=0 // pred_check_branch
    %15 = sbr.rel (0) target = $region9
  $region8: #{net_forward.1} parent=0 // pred_region
    _
  $region9: #{net_forward.1} parent=0 // pred_fallthru
    _
  // Predicated region
  $region10: #{net_forward.1} parent=0 // pred_check
    _
  $region11: #{net_forward.1} parent=0 // pred_check_branch
    %17 = sbr.rel (0) target = $region13
  $region12: #{net_forward.1} parent=0 // pred_region
    _
  $region13: #{net_forward.1} parent=0 // pred_fallthru
    _
  // Predicated region
  $region14: #{net_forward.1} parent=0 // pred_check
    _
  $region15: #{net_forward.1} parent=0 // pred_check_branch
    %19 = sbr.rel (0) target = $region17
  $region16: #{net_forward.1} parent=0 // pred_region
    _
  $region17: #{net_forward.1} parent=0 // pred_fallthru
    _
  // Predicated region
  $region18: #{net_forward.1} parent=0 // pred_check
    _
  $region19: #{net_forward.1} parent=0 // pred_check_branch
    %21 = sbr.rel (0) target = $region21
  $region20: #{net_forward.1} parent=0 // pred_region
    _
  $region21: #{net_forward.1} parent=0 // pred_fallthru
    _
  // Predicated region
  $region22: #{net_forward.1} parent=0 // pred_check
    _
  $region23: #{net_forward.1} parent=0 // pred_check_branch
    %23 = sbr.rel (0) target = $region25
  $region24: #{net_forward.1} parent=0 // pred_region
    _
  $region25: #{net_forward.1} parent=0 // pred_fallthru
    _
  // Predicated region
  $region26: #{net_forward.1} parent=0 // pred_check
    _
  $region27: #{net_forward.1} parent=0 // pred_check_branch
    %25 = sbr.rel (0) target = $region29
  $region28: #{net_forward.1} parent=0 // pred_region
    _
  $region29: #{net_forward.1} parent=0 // pred_fallthru
    _
  %v27 = vld [vmem:[%s0] sm:$0xff]
  %v28 = vld [vmem:[%s0 + $0x8] sm:$0xff]
  %v29 = vld [vmem:[%s0 + $0x10] sm:$0xff]
  %v30 = vld [vmem:[%s0 + $0x18] sm:$0xf]
  %v31 = vld [vmem:[%s2] sm:$0x1]
  %v32 = vld [vmem:[%s4] sm:$0x1]
  %v33 = vld [vmem:[%s6] sm:$0x1]
  %v34 = vld [vmem:[%s1] sm:$0xf]
  %v35 = vld [vmem:[%s1 + $0x4] sm:$0xf]
  %v36 = vld [vmem:[%s1 + $0x8] sm:$0xf]
  %v37 = vld [vmem:[%s1 + $0xc] sm:$0xf]
  %v38 = vld [vmem:[%s1 + $0x10] sm:$0xf]
  %v39 = vld [vmem:[%s1 + $0x14] sm:$0xf]
  %v40 = vld [vmem:[%s1 + $0x18] sm:$0xf]
  %v41 = vld [vmem:[%s1 + $0x1c] sm:$0xf]
  %v42 = vld [vmem:[%s1 + $0x20] sm:$0xf]
  %v43 = vld [vmem:[%s1 + $0x24] sm:$0xf]
  %v44 = vld [vmem:[%s1 + $0x28] sm:$0xf]
  %v45 = vld [vmem:[%s1 + $0x2c] sm:$0xf]
  %v46 = vld [vmem:[%s1 + $0x30] sm:$0xf]
  %v47 = vld [vmem:[%s1 + $0x34] sm:$0xf]
  %v48 = vld [vmem:[%s1 + $0x38] sm:$0xf]
  %v49 = vld [vmem:[%s1 + $0x3c] sm:$0xf]
  %v50 = vld [vmem:[%s1 + $0x40] sm:$0xf]
  %v51 = vld [vmem:[%s1 + $0x44] sm:$0xf]
  %v52 = vld [vmem:[%s1 + $0x48] sm:$0xf]
  %v53 = vld [vmem:[%s1 + $0x4c] sm:$0xf]
  %v54 = vld [vmem:[%s1 + $0x50] sm:$0xf]
  %v55 = vld [vmem:[%s1 + $0x54] sm:$0xf]
  %v56 = vld [vmem:[%s1 + $0x58] sm:$0xf]
  %v57 = vld [vmem:[%s1 + $0x5c] sm:$0xf]
  %v58 = vld [vmem:[%s1 + $0x60] sm:$0xf]
  %v59 = vld [vmem:[%s1 + $0x64] sm:$0xf]
  %v60 = vld [vmem:[%s1 + $0x68] sm:$0xf]
  %v61 = vld [vmem:[%s1 + $0x6c] sm:$0xf]
  %v62 = vld [vmem:[%s1 + $0x70] sm:$0xf]
  %v63 = vld [vmem:[%s1 + $0x74] sm:$0xf]
  %v64 = vld [vmem:[%s1 + $0x78] sm:$0xf]
  %v65 = vld [vmem:[%s1 + $0x7c] sm:$0xf]
  %v66 = vld [vmem:[%s1 + $0x80] sm:$0xf]
  %v67 = vld [vmem:[%s1 + $0x84] sm:$0xf]
  %v68 = vld [vmem:[%s1 + $0x88] sm:$0xf]
  %v69 = vld [vmem:[%s1 + $0x8c] sm:$0xf]
  %v70 = vld [vmem:[%s1 + $0x90] sm:$0xf]
  %v71 = vld [vmem:[%s1 + $0x94] sm:$0xf]
  %v72 = vld [vmem:[%s1 + $0x98] sm:$0xf]
  %v73 = vld [vmem:[%s1 + $0x9c] sm:$0xf]
  %v74 = vld [vmem:[%s1 + $0xa0] sm:$0xf]
  %v75 = vld [vmem:[%s1 + $0xa4] sm:$0xf]
  %v76 = vld [vmem:[%s1 + $0xa8] sm:$0xf]
  %v77 = vld [vmem:[%s1 + $0xac] sm:$0xf]
  %v78 = vld [vmem:[%s1 + $0xb0] sm:$0xf]
  %v79 = vld [vmem:[%s1 + $0xb4] sm:$0xf]
  %v80 = vld [vmem:[%s1 + $0xb8] sm:$0xf]
  %v81 = vld [vmem:[%s1 + $0xbc] sm:$0xf]
  %v82 = vld [vmem:[%s1 + $0xc0] sm:$0xf]
  %v83 = vld [vmem:[%s1 + $0xc4] sm:$0xf]
  %v84 = vld [vmem:[%s1 + $0xc8] sm:$0xf]
  %v85 = vld [vmem:[%s1 + $0xcc] sm:$0xf]
  %v86 = vld [vmem:[%s1 + $0xd0] sm:$0xf]
  %v87 = vld [vmem:[%s1 + $0xd4] sm:$0xf]
  %v88 = vld [vmem:[%s1 + $0xd8] sm:$0xf]
  %v89 = vld [vmem:[%s1 + $0xdc] sm:$0xf]
  %v90 = vld [vmem:[%s1 + $0xe0] sm:$0xf]
  %v91 = vld [vmem:[%s1 + $0xe4] sm:$0xf]
  %v92 = vld [vmem:[%s1 + $0xe8] sm:$0xf]
  %v93 = vld [vmem:[%s1 + $0xec] sm:$0xf]
  %v94 = vld [vmem:[%s1 + $0xf0] sm:$0xf]
  %v95 = vld [vmem:[%s1 + $0xf4] sm:$0xf]
  %v96 = vld [vmem:[%s1 + $0xf8] sm:$0xf]
  %v97 = vld [vmem:[%s1 + $0xfc] sm:$0xf]
  %v98 = vld [vmem:[%s1 + $0x100] sm:$0xf]
  %v99 = vld [vmem:[%s1 + $0x104] sm:$0xf]
  %v100 = vld [vmem:[%s1 + $0x108] sm:$0xf]
  %v101 = vld [vmem:[%s1 + $0x10c] sm:$0xf]
  %v102 = vld [vmem:[%s1 + $0x110] sm:$0xf]
  %v103 = vld [vmem:[%s1 + $0x114] sm:$0xf]
  %v104 = vld [vmem:[%s1 + $0x118] sm:$0xf]
  %v105 = vld [vmem:[%s1 + $0x11c] sm:$0xf]
  %v106 = vld [vmem:[%s1 + $0x120] sm:$0xf]
  %v107 = vld [vmem:[%s1 + $0x124] sm:$0xf]
  %v108 = vld [vmem:[%s1 + $0x128] sm:$0xf]
  %v109 = vld [vmem:[%s1 + $0x12c] sm:$0xf]
  %v110 = vld [vmem:[%s1 + $0x130] sm:$0xf]
  %v111 = vld [vmem:[%s1 + $0x134] sm:$0xf]
  %v112 = vld [vmem:[%s1 + $0x138] sm:$0xf]
  %v113 = vld [vmem:[%s1 + $0x13c] sm:$0xf]
  %v114 = vld [vmem:[%s1 + $0x140] sm:$0xf]
  %v115 = vld [vmem:[%s1 + $0x144] sm:$0xf]
  %v116 = vld [vmem:[%s1 + $0x148] sm:$0xf]
  %v117 = vld [vmem:[%s1 + $0x14c] sm:$0xf]
  %v118 = vld [vmem:[%s1 + $0x150] sm:$0xf]
  %v119 = vld [vmem:[%s1 + $0x154] sm:$0xf]
  %v120 = vld [vmem:[%s1 + $0x158] sm:$0xf]
  %v121 = vld [vmem:[%s1 + $0x15c] sm:$0xf]
  %v122 = vld [vmem:[%s1 + $0x160] sm:$0xf]
  %v123 = vld [vmem:[%s1 + $0x164] sm:$0xf]
  %v124 = vld [vmem:[%s1 + $0x168] sm:$0xf]
  %v125 = vld [vmem:[%s1 + $0x16c] sm:$0xf]
  %v126 = vld [vmem:[%s1 + $0x170] sm:$0xf]
  %v127 = vld [vmem:[%s1 + $0x174] sm:$0xf]
  %v128 = vld [vmem:[%s1 + $0x178] sm:$0xf]
  %v129 = vld [vmem:[%s1 + $0x17c] sm:$0xf]
  %v130 = vld [vmem:[%s1 + $0x180] sm:$0xf]
  %v131 = vld [vmem:[%s1 + $0x184] sm:$0xf]
  %v133 = vlaneseq
  %v134 = vshrl.u32 %v133, 7
  %v135 = vsub.s32 0, %v134
  %v136 = vrot.slane %v31, %v135
  %v142 = vunpack.c.l.b16 %v27
  %v143 = vunpack.c.h.b16 %v27
  %v144 = vunpack.c.l.b16 %v28
  %v145 = vunpack.c.h.b16 %v28
  %v146 = vunpack.c.l.b16 %v29
  %v147 = vunpack.c.h.b16 %v29
  %v148 = vunpack.c.l.b16 %v30
  %v149 = vpack.c.b16 %v142, %v142
  %v150 = vpack.c.b16 %v143, %v143
  %v151 = vpack.c.b16 %v144, %v144
  %v152 = vpack.c.b16 %v145, %v145
  %v153 = vpack.c.b16 %v146, %v146
  %v154 = vpack.c.b16 %v147, %v147
  %v155 = vpack.c.b16 %v148, %v148
  %v260 = vunpack.c.l.b16 %v34
  %v261 = vunpack.c.l.b16 %v35
  %v262 = vunpack.c.l.b16 %v36
  %v263 = vunpack.c.l.b16 %v37
  %v264 = vunpack.c.l.b16 %v38
  %v265 = vunpack.c.l.b16 %v39
  %v266 = vunpack.c.l.b16 %v40
  %v267 = vunpack.c.l.b16 %v41
  %v268 = vunpack.c.l.b16 %v42
  %v269 = vunpack.c.l.b16 %v43
  %v270 = vunpack.c.l.b16 %v44
  %v271 = vunpack.c.l.b16 %v45
  %v272 = vunpack.c.l.b16 %v46
  %v273 = vunpack.c.l.b16 %v47
  %v274 = vunpack.c.l.b16 %v48
  %v275 = vunpack.c.l.b16 %v49
  %v276 = vunpack.c.l.b16 %v50
  %v277 = vunpack.c.l.b16 %v51
  %v278 = vunpack.c.l.b16 %v52
  %v279 = vunpack.c.l.b16 %v53
  %v280 = vunpack.c.l.b16 %v54
  %v281 = vunpack.c.l.b16 %v55
  %v282 = vunpack.c.l.b16 %v56
  %v283 = vunpack.c.l.b16 %v57
  %v284 = vunpack.c.l.b16 %v58
  %v285 = vunpack.c.l.b16 %v59
  %v286 = vunpack.c.l.b16 %v60
  %v287 = vunpack.c.l.b16 %v61
  %v288 = vunpack.c.l.b16 %v62
  %v289 = vunpack.c.l.b16 %v63
  %v290 = vunpack.c.l.b16 %v64
  %v291 = vunpack.c.l.b16 %v65
  %v292 = vunpack.c.l.b16 %v66
  %v293 = vunpack.c.l.b16 %v67
  %v294 = vunpack.c.l.b16 %v68
  %v295 = vunpack.c.l.b16 %v69
  %v296 = vunpack.c.l.b16 %v70
  %v297 = vunpack.c.l.b16 %v71
  %v298 = vunpack.c.l.b16 %v72
  %v299 = vunpack.c.l.b16 %v73
  %v300 = vunpack.c.l.b16 %v74
  %v301 = vunpack.c.l.b16 %v75
  %v302 = vunpack.c.l.b16 %v76
  %v303 = vunpack.c.l.b16 %v77
  %v304 = vunpack.c.l.b16 %v78
  %v305 = vunpack.c.l.b16 %v79
  %v306 = vunpack.c.l.b16 %v80
  %v307 = vunpack.c.l.b16 %v81
  %v308 = vunpack.c.l.b16 %v82
  %v309 = vunpack.c.l.b16 %v83
  %v310 = vunpack.c.l.b16 %v84
  %v311 = vunpack.c.l.b16 %v85
  %v312 = vunpack.c.l.b16 %v86
  %v313 = vunpack.c.l.b16 %v87
  %v314 = vunpack.c.l.b16 %v88
  %v315 = vunpack.c.l.b16 %v89
  %v316 = vunpack.c.l.b16 %v90
  %v317 = vunpack.c.l.b16 %v91
  %v318 = vunpack.c.l.b16 %v92
  %v319 = vunpack.c.l.b16 %v93
  %v320 = vunpack.c.l.b16 %v94
  %v321 = vunpack.c.l.b16 %v95
  %v322 = vunpack.c.l.b16 %v96
  %v323 = vunpack.c.l.b16 %v97
  %v324 = vunpack.c.l.b16 %v98
  %v325 = vunpack.c.l.b16 %v99
  %v326 = vunpack.c.l.b16 %v100
  %v327 = vunpack.c.l.b16 %v101
  %v328 = vunpack.c.l.b16 %v102
  %v329 = vunpack.c.l.b16 %v103
  %v330 = vunpack.c.l.b16 %v104
  %v331 = vunpack.c.l.b16 %v105
  %v332 = vunpack.c.l.b16 %v106
  %v333 = vunpack.c.l.b16 %v107
  %v334 = vunpack.c.l.b16 %v108
  %v335 = vunpack.c.l.b16 %v109
  %v336 = vunpack.c.l.b16 %v110
  %v337 = vunpack.c.l.b16 %v111
  %v338 = vunpack.c.l.b16 %v112
  %v339 = vunpack.c.l.b16 %v113
  %v340 = vunpack.c.l.b16 %v114
  %v341 = vunpack.c.l.b16 %v115
  %v342 = vunpack.c.l.b16 %v116
  %v343 = vunpack.c.l.b16 %v117
  %v344 = vunpack.c.l.b16 %v118
  %v345 = vunpack.c.l.b16 %v119
  %v346 = vunpack.c.l.b16 %v120
  %v347 = vunpack.c.l.b16 %v121
  %v348 = vunpack.c.l.b16 %v122
  %v349 = vunpack.c.l.b16 %v123
  %v350 = vunpack.c.l.b16 %v124
  %v351 = vunpack.c.l.b16 %v125
  %v352 = vunpack.c.l.b16 %v126
  %v353 = vunpack.c.l.b16 %v127
  %v354 = vunpack.c.l.b16 %v128
  %v355 = vunpack.c.l.b16 %v129
  %v356 = vunpack.c.l.b16 %v130
  %v357 = vunpack.c.l.b16 %v131
  %v358 = vpack.c.b16 %v261, %v260
  %v359 = vpack.c.b16 %v263, %v262
  %v360 = vpack.c.b16 %v265, %v264
  %v361 = vpack.c.b16 %v267, %v266
  %v362 = vpack.c.b16 %v269, %v268
  %v363 = vpack.c.b16 %v271, %v270
  %v364 = vpack.c.b16 %v273, %v272
  %v365 = vpack.c.b16 %v275, %v274
  %v366 = vpack.c.b16 %v277, %v276
  %v367 = vpack.c.b16 %v279, %v278
  %v368 = vpack.c.b16 %v281, %v280
  %v369 = vpack.c.b16 %v283, %v282
  %v370 = vpack.c.b16 %v285, %v284
  %v371 = vpack.c.b16 %v287, %v286
  %v372 = vpack.c.b16 %v289, %v288
  %v373 = vpack.c.b16 %v291, %v290
  %v374 = vpack.c.b16 %v293, %v292
  %v375 = vpack.c.b16 %v295, %v294
  %v376 = vpack.c.b16 %v297, %v296
  %v377 = vpack.c.b16 %v299, %v298
  %v378 = vpack.c.b16 %v301, %v300
  %v379 = vpack.c.b16 %v303, %v302
  %v380 = vpack.c.b16 %v305, %v304
  %v381 = vpack.c.b16 %v307, %v306
  %v382 = vpack.c.b16 %v309, %v308
  %v383 = vpack.c.b16 %v311, %v310
  %v384 = vpack.c.b16 %v313, %v312
  %v385 = vpack.c.b16 %v315, %v314
  %v386 = vpack.c.b16 %v317, %v316
  %v387 = vpack.c.b16 %v319, %v318
  %v388 = vpack.c.b16 %v321, %v320
  %v389 = vpack.c.b16 %v323, %v322
  %v390 = vpack.c.b16 %v325, %v324
  %v391 = vpack.c.b16 %v327, %v326
  %v392 = vpack.c.b16 %v329, %v328
  %v393 = vpack.c.b16 %v331, %v330
  %v394 = vpack.c.b16 %v333, %v332
  %v395 = vpack.c.b16 %v335, %v334
  %v396 = vpack.c.b16 %v337, %v336
  %v397 = vpack.c.b16 %v339, %v338
  %v398 = vpack.c.b16 %v341, %v340
  %v399 = vpack.c.b16 %v343, %v342
  %v400 = vpack.c.b16 %v345, %v344
  %v401 = vpack.c.b16 %v347, %v346
  %v402 = vpack.c.b16 %v349, %v348
  %v403 = vpack.c.b16 %v351, %v350
  %v404 = vpack.c.b16 %v353, %v352
  %v405 = vpack.c.b16 %v355, %v354
  %v406 = vpack.c.b16 %v357, %v356
  %vm456 = vcmask 130048
  %v458 = vsel %vm456, %v155, 0
  %460 = vmatprep.subr.bf16.mxu0 0
  %461 = vmatpush1.bf16.msra.mxu0 %v358
  %462 = vmatprep.subr.bf16.mxu0 0
  %463 = vmatpush1.bf16.msra.mxu0 %v359
  %464 = vmatprep.subr.bf16.mxu0 0
  %465 = vmatpush1.bf16.msra.mxu0 %v360
  %466 = vmatprep.subr.bf16.mxu0 0
  %467 = vmatpush1.bf16.msra.mxu0 %v361
  %468 = vmatprep.subr.bf16.mxu0 0
  %469 = vmatpush1.bf16.msra.mxu0 %v362
  %470 = vmatprep.subr.bf16.mxu0 0
  %471 = vmatpush1.bf16.msra.mxu0 %v363
  %472 = vmatprep.subr.bf16.mxu0 0
  %473 = vmatpush1.bf16.msra.mxu0 %v364
  %474 = vmatprep.subr.bf16.mxu0 0
  %475 = vmatpush1.bf16.msra.mxu0 %v365
  %476 = vmatprep.subr.bf16.mxu0 0
  %477 = vmatpush1.bf16.msra.mxu0 %v366
  %478 = vmatprep.subr.bf16.mxu0 0
  %479 = vmatpush1.bf16.msra.mxu0 %v367
  %480 = vmatprep.subr.bf16.mxu0 0
  %481 = vmatpush1.bf16.msra.mxu0 %v368
  %482 = vmatprep.subr.bf16.mxu0 0
  %483 = vmatpush1.bf16.msra.mxu0 %v369
  %484 = vmatprep.subr.bf16.mxu0 0
  %485 = vmatpush1.bf16.msra.mxu0 %v370
  %486 = vmatprep.subr.bf16.mxu0 0
  %487 = vmatpush1.bf16.msra.mxu0 %v371
  %488 = vmatprep.subr.bf16.mxu0 0
  %489 = vmatpush1.bf16.msra.mxu0 %v372
  %490 = vmatprep.subr.bf16.mxu0 0
  %491 = vmatpush1.bf16.msra.mxu0 %v373
  %492 = vmatprep.mubr.bf16.mxu0 %v150
  %493 = vmatmul.mubr.bf16.gmra.mrb[0].mxu0 %v149
  %v494 = vpop.f32.mrb[0].mxu0
  %v495 = vadd.f32 %v136, %v494
  %v496 = vpop.f32.mrb[0].mxu0
  %v497 = vpop.f32.mrb[0].mxu0
  %v498 = vpop.f32.mrb[0].mxu0
  %499 = vdwg.mxu0
  %500 = vmatprep.subr.bf16.mxu0 0
  %501 = vmatpush1.bf16.msra.mxu0 %v374
  %502 = vmatprep.subr.bf16.mxu0 0
  %503 = vmatpush1.bf16.msra.mxu0 %v375
  %504 = vmatprep.subr.bf16.mxu0 0
  %505 = vmatpush1.bf16.msra.mxu0 %v376
  %506 = vmatprep.subr.bf16.mxu0 0
  %507 = vmatpush1.bf16.msra.mxu0 %v377
  %508 = vmatprep.subr.bf16.mxu0 0
  %509 = vmatpush1.bf16.msra.mxu0 %v378
  %510 = vmatprep.subr.bf16.mxu0 0
  %511 = vmatpush1.bf16.msra.mxu0 %v379
  %512 = vmatprep.subr.bf16.mxu0 0
  %513 = vmatpush1.bf16.msra.mxu0 %v380
  %514 = vmatprep.subr.bf16.mxu0 0
  %515 = vmatpush1.bf16.msra.mxu0 %v381
  %516 = vmatprep.subr.bf16.mxu0 0
  %517 = vmatpush1.bf16.msra.mxu0 %v382
  %518 = vmatprep.subr.bf16.mxu0 0
  %519 = vmatpush1.bf16.msra.mxu0 %v383
  %520 = vmatprep.subr.bf16.mxu0 0
  %521 = vmatpush1.bf16.msra.mxu0 %v384
  %522 = vmatprep.subr.bf16.mxu0 0
  %523 = vmatpush1.bf16.msra.mxu0 %v385
  %524 = vmatprep.subr.bf16.mxu0 0
  %525 = vmatpush1.bf16.msra.mxu0 %v386
  %526 = vmatprep.subr.bf16.mxu0 0
  %527 = vmatpush1.bf16.msra.mxu0 %v387
  %528 = vmatprep.subr.bf16.mxu0 0
  %529 = vmatpush1.bf16.msra.mxu0 %v388
  %530 = vmatprep.subr.bf16.mxu0 0
  %531 = vmatpush1.bf16.msra.mxu0 %v389
  %532 = vmatprep.mubr.bf16.mxu0 %v152
  %533 = vmatmul.mubr.bf16.gmra.mrb[0].mxu0 %v151
  %v534 = vpop.f32.mrb[0].mxu0
  %v535 = vadd.f32 %v495, %v534
  %v536 = vpop.f32.mrb[0].mxu0
  %v537 = vpop.f32.mrb[0].mxu0
  %v538 = vpop.f32.mrb[0].mxu0
  %539 = vdwg.mxu0
  %540 = vmatprep.subr.bf16.mxu0 0
  %541 = vmatpush1.bf16.msra.mxu0 %v390
  %542 = vmatprep.subr.bf16.mxu0 0
  %543 = vmatpush1.bf16.msra.mxu0 %v391
  %544 = vmatprep.subr.bf16.mxu0 0
  %545 = vmatpush1.bf16.msra.mxu0 %v392
  %546 = vmatprep.subr.bf16.mxu0 0
  %547 = vmatpush1.bf16.msra.mxu0 %v393
  %548 = vmatprep.subr.bf16.mxu0 0
  %549 = vmatpush1.bf16.msra.mxu0 %v394
  %550 = vmatprep.subr.bf16.mxu0 0
  %551 = vmatpush1.bf16.msra.mxu0 %v395
  %552 = vmatprep.subr.bf16.mxu0 0
  %553 = vmatpush1.bf16.msra.mxu0 %v396
  %554 = vmatprep.subr.bf16.mxu0 0
  %555 = vmatpush1.bf16.msra.mxu0 %v397
  %556 = vmatprep.subr.bf16.mxu0 0
  %557 = vmatpush1.bf16.msra.mxu0 %v398
  %558 = vmatprep.subr.bf16.mxu0 0
  %559 = vmatpush1.bf16.msra.mxu0 %v399
  %560 = vmatprep.subr.bf16.mxu0 0
  %561 = vmatpush1.bf16.msra.mxu0 %v400
  %562 = vmatprep.subr.bf16.mxu0 0
  %563 = vmatpush1.bf16.msra.mxu0 %v401
  %564 = vmatprep.subr.bf16.mxu0 0
  %565 = vmatpush1.bf16.msra.mxu0 %v402
  %566 = vmatprep.subr.bf16.mxu0 0
  %567 = vmatpush1.bf16.msra.mxu0 %v403
  %568 = vmatprep.subr.bf16.mxu0 0
  %569 = vmatpush1.bf16.msra.mxu0 %v404
  %570 = vmatprep.subr.bf16.mxu0 0
  %571 = vmatpush1.bf16.msra.mxu0 %v405
  %572 = vmatprep.mubr.bf16.mxu0 %v154
  %573 = vmatmul.mubr.bf16.gmra.mrb[0].mxu0 %v153
  %v574 = vpop.f32.mrb[0].mxu0
  %v575 = vadd.f32 %v535, %v574
  %v576 = vpop.f32.mrb[0].mxu0
  %v577 = vpop.f32.mrb[0].mxu0
  %v578 = vpop.f32.mrb[0].mxu0
  %579 = vdwg.mxu0
  %580 = vmatprep.subr.bf16.mxu0 0
  %581 = vmatpush1.bf16.msra.mxu0 %v406
  %582 = vmatprep.subr.bf16.mxu0 0
  %583 = vmatpush1.bf16.msra.mxu0 0
  %584 = vmatprep.subr.bf16.mxu0 0
  %585 = vmatpush1.bf16.msra.mxu0 0
  %586 = vmatprep.subr.bf16.mxu0 0
  %587 = vmatpush1.bf16.msra.mxu0 0
  %588 = vmatprep.subr.bf16.mxu0 0
  %589 = vmatpush1.bf16.msra.mxu0 0
  %590 = vmatprep.subr.bf16.mxu0 0
  %591 = vmatpush1.bf16.msra.mxu0 0
  %592 = vmatprep.subr.bf16.mxu0 0
  %593 = vmatpush1.bf16.msra.mxu0 0
  %594 = vmatprep.subr.bf16.mxu0 0
  %595 = vmatpush1.bf16.msra.mxu0 0
  %596 = vmatprep.subr.bf16.mxu0 0
  %597 = vmatpush1.bf16.msra.mxu0 0
  %598 = vmatprep.subr.bf16.mxu0 0
  %599 = vmatpush1.bf16.msra.mxu0 0
  %600 = vmatprep.subr.bf16.mxu0 0
  %601 = vmatpush1.bf16.msra.mxu0 0
  %602 = vmatprep.subr.bf16.mxu0 0
  %603 = vmatpush1.bf16.msra.mxu0 0
  %604 = vmatprep.subr.bf16.mxu0 0
  %605 = vmatpush1.bf16.msra.mxu0 0
  %606 = vmatprep.subr.bf16.mxu0 0
  %607 = vmatpush1.bf16.msra.mxu0 0
  %608 = vmatprep.subr.bf16.mxu0 0
  %609 = vmatpush1.bf16.msra.mxu0 0
  %610 = vmatprep.subr.bf16.mxu0 0
  %611 = vmatpush1.bf16.msra.mxu0 0
  %612 = vmatprep.mubr.bf16.mxu0 0
  %613 = vmatmul.mubr.bf16.gmra.mrb[0].mxu0 %v458
  %v614 = vpop.f32.mrb[0].mxu0
  %v615 = vadd.f32 %v575, %v614
  %v616 = vpop.f32.mrb[0].mxu0
  %v617 = vpop.f32.mrb[0].mxu0
  %v618 = vpop.f32.mrb[0].mxu0
  %619 = vdwg.mxu0
  %v620 = vmax.f32 %v615, 0.0
  %v621 = vpack.c.bf16 %v620, %v620
  %v622 = vld [vmem:[%s3] sm:$0xf]
  %v623 = vld [vmem:[%s3 + $0x4] sm:$0xf]
  %v624 = vld [vmem:[%s3 + $0x8] sm:$0xf]
  %v625 = vld [vmem:[%s3 + $0xc] sm:$0xf]
  %v626 = vld [vmem:[%s3 + $0x10] sm:$0xf]
  %v627 = vld [vmem:[%s3 + $0x14] sm:$0xf]
  %v628 = vld [vmem:[%s3 + $0x18] sm:$0xf]
  %v629 = vld [vmem:[%s3 + $0x1c] sm:$0xf]
  %v630 = vld [vmem:[%s3 + $0x20] sm:$0xf]
  %v631 = vld [vmem:[%s3 + $0x24] sm:$0xf]
  %v632 = vld [vmem:[%s3 + $0x28] sm:$0xf]
  %v633 = vld [vmem:[%s3 + $0x2c] sm:$0xf]
  %v634 = vld [vmem:[%s3 + $0x30] sm:$0xf]
  %v635 = vld [vmem:[%s3 + $0x34] sm:$0xf]
  %v636 = vld [vmem:[%s3 + $0x38] sm:$0xf]
  %v637 = vld [vmem:[%s3 + $0x3c] sm:$0xf]
  %v639 = vlaneseq
  %v640 = vshrl.u32 %v639, 7
  %v641 = vsub.s32 0, %v640
  %v642 = vrot.slane %v32, %v641
  %v660 = vunpack.c.l.b16 %v622
  %v661 = vunpack.c.l.b16 %v623
  %v662 = vunpack.c.l.b16 %v624
  %v663 = vunpack.c.l.b16 %v625
  %v664 = vunpack.c.l.b16 %v626
  %v665 = vunpack.c.l.b16 %v627
  %v666 = vunpack.c.l.b16 %v628
  %v667 = vunpack.c.l.b16 %v629
  %v668 = vunpack.c.l.b16 %v630
  %v669 = vunpack.c.l.b16 %v631
  %v670 = vunpack.c.l.b16 %v632
  %v671 = vunpack.c.l.b16 %v633
  %v672 = vunpack.c.l.b16 %v634
  %v673 = vunpack.c.l.b16 %v635
  %v674 = vunpack.c.l.b16 %v636
  %v675 = vunpack.c.l.b16 %v637
  %v676 = vpack.c.b16 %v661, %v660
  %v677 = vpack.c.b16 %v663, %v662
  %v678 = vpack.c.b16 %v665, %v664
  %v679 = vpack.c.b16 %v667, %v666
  %v680 = vpack.c.b16 %v669, %v668
  %v681 = vpack.c.b16 %v671, %v670
  %v682 = vpack.c.b16 %v673, %v672
  %v683 = vpack.c.b16 %v675, %v674
  %692 = vmatprep.subr.bf16.mxu0 0
  %693 = vmatpush1.bf16.msra.mxu0 %v676
  %694 = vmatprep.subr.bf16.mxu0 0
  %695 = vmatpush1.bf16.msra.mxu0 %v677
  %696 = vmatprep.subr.bf16.mxu0 0
  %697 = vmatpush1.bf16.msra.mxu0 %v678
  %698 = vmatprep.subr.bf16.mxu0 0
  %699 = vmatpush1.bf16.msra.mxu0 %v679
  %700 = vmatprep.subr.bf16.mxu0 0
  %701 = vmatpush1.bf16.msra.mxu0 %v680
  %702 = vmatprep.subr.bf16.mxu0 0
  %703 = vmatpush1.bf16.msra.mxu0 %v681
  %704 = vmatprep.subr.bf16.mxu0 0
  %705 = vmatpush1.bf16.msra.mxu0 %v682
  %706 = vmatprep.subr.bf16.mxu0 0
  %707 = vmatpush1.bf16.msra.mxu0 %v683
  %708 = vmatprep.subr.bf16.mxu0 0
  %709 = vmatpush1.bf16.msra.mxu0 0
  %710 = vmatprep.subr.bf16.mxu0 0
  %711 = vmatpush1.bf16.msra.mxu0 0
  %712 = vmatprep.subr.bf16.mxu0 0
  %713 = vmatpush1.bf16.msra.mxu0 0
  %714 = vmatprep.subr.bf16.mxu0 0
  %715 = vmatpush1.bf16.msra.mxu0 0
  %716 = vmatprep.subr.bf16.mxu0 0
  %717 = vmatpush1.bf16.msra.mxu0 0
  %718 = vmatprep.subr.bf16.mxu0 0
  %719 = vmatpush1.bf16.msra.mxu0 0
  %720 = vmatprep.subr.bf16.mxu0 0
  %721 = vmatpush1.bf16.msra.mxu0 0
  %722 = vmatprep.subr.bf16.mxu0 0
  %723 = vmatpush1.bf16.msra.mxu0 0
  %724 = vmatprep.mubr.bf16.mxu0 0
  %725 = vmatmul.mubr.bf16.gmra.mrb[0].mxu0 %v621
  %v726 = vpop.f32.mrb[0].mxu0
  %v727 = vadd.f32 %v642, %v726
  %v728 = vpop.f32.mrb[0].mxu0
  %v729 = vpop.f32.mrb[0].mxu0
  %v730 = vpop.f32.mrb[0].mxu0
  %731 = vdwg.mxu0
  %v732 = vmax.f32 %v727, 0.0
  %v733 = vpack.c.bf16 %v732, %v732
  %v734 = vld [vmem:[%s5] sm:$0xf]
  %v735 = vld [vmem:[%s5 + $0x4] sm:$0xf]
  %v736 = vld [vmem:[%s5 + $0x8] sm:$0xf]
  %v737 = vld [vmem:[%s5 + $0xc] sm:$0xf]
  %v738 = vld [vmem:[%s5 + $0x10] sm:$0xf]
  %v739 = vld [vmem:[%s5 + $0x14] sm:$0xf]
  %v740 = vld [vmem:[%s5 + $0x18] sm:$0xf]
  %v741 = vld [vmem:[%s5 + $0x1c] sm:$0xf]
  %v742 = vld [vmem:[%s5 + $0x20] sm:$0xf]
  %v743 = vld [vmem:[%s5 + $0x24] sm:$0xf]
  %v744 = vld [vmem:[%s5 + $0x28] sm:$0xf]
  %v745 = vld [vmem:[%s5 + $0x2c] sm:$0xf]
  %v746 = vld [vmem:[%s5 + $0x30] sm:$0xf]
  %v747 = vld [vmem:[%s5 + $0x34] sm:$0xf]
  %v748 = vld [vmem:[%s5 + $0x38] sm:$0xf]
  %v749 = vld [vmem:[%s5 + $0x3c] sm:$0xf]
  %v751 = vlaneseq
  %v752 = vshrl.u32 %v751, 7
  %v753 = vsub.s32 0, %v752
  %v754 = vrot.slane %v33, %v753
  %v772 = vunpack.c.l.b16 %v734
  %v773 = vunpack.c.l.b16 %v735
  %v774 = vunpack.c.l.b16 %v736
  %v775 = vunpack.c.l.b16 %v737
  %v776 = vunpack.c.l.b16 %v738
  %v777 = vunpack.c.l.b16 %v739
  %v778 = vunpack.c.l.b16 %v740
  %v779 = vunpack.c.l.b16 %v741
  %v780 = vunpack.c.l.b16 %v742
  %v781 = vunpack.c.l.b16 %v743
  %v782 = vunpack.c.l.b16 %v744
  %v783 = vunpack.c.l.b16 %v745
  %v784 = vunpack.c.l.b16 %v746
  %v785 = vunpack.c.l.b16 %v747
  %v786 = vunpack.c.l.b16 %v748
  %v787 = vunpack.c.l.b16 %v749
  %v788 = vpack.c.b16 %v773, %v772
  %v789 = vpack.c.b16 %v775, %v774
  %v790 = vpack.c.b16 %v777, %v776
  %v791 = vpack.c.b16 %v779, %v778
  %v792 = vpack.c.b16 %v781, %v780
  %v793 = vpack.c.b16 %v783, %v782
  %v794 = vpack.c.b16 %v785, %v784
  %v795 = vpack.c.b16 %v787, %v786
  %804 = vmatprep.subr.bf16.mxu0 0
  %805 = vmatpush1.bf16.msra.mxu0 %v788
  %806 = vmatprep.subr.bf16.mxu0 0
  %807 = vmatpush1.bf16.msra.mxu0 %v789
  %808 = vmatprep.subr.bf16.mxu0 0
  %809 = vmatpush1.bf16.msra.mxu0 %v790
  %810 = vmatprep.subr.bf16.mxu0 0
  %811 = vmatpush1.bf16.msra.mxu0 %v791
  %812 = vmatprep.subr.bf16.mxu0 0
  %813 = vmatpush1.bf16.msra.mxu0 %v792
  %814 = vmatprep.subr.bf16.mxu0 0
  %815 = vmatpush1.bf16.msra.mxu0 %v793
  %816 = vmatprep.subr.bf16.mxu0 0
  %817 = vmatpush1.bf16.msra.mxu0 %v794
  %818 = vmatprep.subr.bf16.mxu0 0
  %819 = vmatpush1.bf16.msra.mxu0 %v795
  %820 = vmatprep.subr.bf16.mxu0 0
  %821 = vmatpush1.bf16.msra.mxu0 0
  %822 = vmatprep.subr.bf16.mxu0 0
  %823 = vmatpush1.bf16.msra.mxu0 0
  %824 = vmatprep.subr.bf16.mxu0 0
  %825 = vmatpush1.bf16.msra.mxu0 0
  %826 = vmatprep.subr.bf16.mxu0 0
  %827 = vmatpush1.bf16.msra.mxu0 0
  %828 = vmatprep.subr.bf16.mxu0 0
  %829 = vmatpush1.bf16.msra.mxu0 0
  %830 = vmatprep.subr.bf16.mxu0 0
  %831 = vmatpush1.bf16.msra.mxu0 0
  %832 = vmatprep.subr.bf16.mxu0 0
  %833 = vmatpush1.bf16.msra.mxu0 0
  %834 = vmatprep.subr.bf16.mxu0 0
  %835 = vmatpush1.bf16.msra.mxu0 0
  %836 = vmatprep.mubr.bf16.mxu0 0
  %837 = vmatmul.mubr.bf16.gmra.mrb[0].mxu0 %v733
  %v838 = vpop.f32.mrb[0].mxu0
  %v839 = vadd.f32 %v754, %v838
  %v840 = vpop.f32.mrb[0].mxu0
  %v841 = vpop.f32.mrb[0].mxu0
  %v842 = vpop.f32.mrb[0].mxu0
  %843 = vdwg.mxu0
  %v844 = vmax.f32 %v839, 0.0
  %v845 = vlaneseq
  %v846 = vand.u32 %v845, 127
  %vm847 = vcmp.lt.s32.totalorder %v846, 10
  %v848 = vsel %vm847, %v844, -1e+30
  %849 = vmax.xlane.f32.xlu0 %v848
  %v850 = vpop.xlane.xlu0 %849
  %v851 = vsub.f32 %v848, %v850
  %v852 = vmul.f32 %v851, 1.442695
  %v853 = vpow.pop %v852
  %854 = vadd.xlane.f32.xlu0 %v853
  %v855 = vpop.xlane.xlu0 %854
  %v856 = vlog2.pop %v855
  %v857 = vmul.f32 %v856, 0.6931472
  %v858 = vsub.f32 %v851, %v857
  %859 = vst [vmem:[%s7] sm:$0xff] %v858
  // Predicated region
  $region30: #{net_forward.1} parent=0 // pred_check
    _
  $region31: #{net_forward.1} parent=0 // pred_check_branch
    %861 = sbr.rel (0) target = $region33
  $region32: #{net_forward.1} parent=0 // pred_region
    _
  $region33: #{net_forward.1} parent=0 // pred_fallthru
    _
  // Predicated region
  $region34: #{net_forward.1} parent=0 // pred_check
    _
  $region35: #{net_forward.1} parent=0 // pred_check_branch
    %863 = sbr.rel (0) target = $region37
  $region36: #{net_forward.1} parent=0 // pred_region
    _
  $region37: #{net_forward.1} parent=0 // pred_fallthru
    _

</llo_original>
